<compile_context>
chip_gen: v5e
topology: v5e:2x2
jax: 0.10.0
libtpu: 0.0.40
codegen_flags: <defaults>
</compile_context>

<pallas_src>
import math
import collections
from functools import partial

import jax
import jax.numpy as jnp
from jax.experimental import pallas as pl
from jax.experimental.pallas import tpu as pltpu


# -----------------------------------------------------------------------------
# channel / depth adjustment helpers (torchvision EfficientNet semantics)
# -----------------------------------------------------------------------------
def _make_divisible(v, divisor=8, min_value=None):
    if min_value is None:
        min_value = divisor
    new_v = max(min_value, int(v + divisor / 2) // divisor * divisor)
    if new_v < 0.9 * v:
        new_v += divisor
    return new_v


def _adjust_channels(channels, mult):
    return _make_divisible(channels * mult, 8)


def adjust_depth(nlayers, depth_mult):
    return int(math.ceil(nlayers * depth_mult))


BlockMeta = collections.namedtuple(
    "BlockMeta", ["in_chn", "mid_chn", "out_chn", "stride", "residual"])

_LANE = 128


# -----------------------------------------------------------------------------
# Fused cell kernel (channel-major layout, lane-dense stores)
# -----------------------------------------------------------------------------
def _cell_kernel(*refs, meta):
    """refs = (x_ref, <per-block weights...>, o_ref).

    Per block the weight refs are (w1, b1, w3, b3[, w2, b2]) with
      w1: (mid, in)  bf16   b1: (mid, 1)  f32    expand   (ReLU)
      w3: (out, mid) bf16   b3: (out, 1)  f32    project  (linear)
      w2: (out, in)  bf16   b2: (out, 1)  f32    residual (linear), optional
    x_ref: (Cin, tm)  o_ref: (Cout, tm)  -- lane dim is the spatial tile
    (multiple of 128 -> unmasked, lane-dense vector stores).
    """
    x_ref = refs[0]
    o_ref = refs[-1]
    w_refs = refs[1:-1]

    # bf16 MXU operand; f32 accumulation everywhere (preferred_element_type).
    xb = x_ref[...].astype(jnp.bfloat16)          # (Cin, tm)
    out = None
    idx = 0
    for m in meta:                                # statically unrolled over blocks
        w1 = w_refs[idx][...]
        b1 = w_refs[idx + 1][...]
        w3 = w_refs[idx + 2][...]
        b3 = w_refs[idx + 3][...]
        idx += 4
        # expand: z = relu(w1 @ x + b1)   (stays in vregs, never touches HBM)
        z = jnp.dot(w1, xb, preferred_element_type=jnp.float32) + b1
        z = jnp.maximum(z, 0.0).astype(jnp.bfloat16)   # bf16 bounds live z footprint
        # project: o = w3 @ z + b3
        o = jnp.dot(w3, z, preferred_element_type=jnp.float32) + b3
        if m.residual:
            w2 = w_refs[idx][...]
            b2 = w_refs[idx + 1][...]
            idx += 2
            o = o + jnp.dot(w2, xb, preferred_element_type=jnp.float32) + b2
        xb = o.astype(jnp.bfloat16)               # next block's input (bf16)
        out = o                                   # keep f32 for the final store
    o_ref[...] = out.astype(o_ref.dtype)


def _choose_row_tile(N, HW, cin, cout, mid_max, act_bytes, out_bytes):
    """Lane tile: multiple of 128, sized by bytes-per-step (amortize the ~0.35us
    fixed grid-step overhead) under a VMEM budget that fits every TPU generation,
    while keeping >= 2 independent grid steps for v7x megacore when possible."""
    hw_pad = pl.cdiv(HW, _LANE) * _LANE

    # Conservative per-step VMEM model (bytes per lane of tile):
    per_lane = (2 * cin * act_bytes            # double-buffered input tile
                + 2 * cout * out_bytes         # double-buffered output tile
                + mid_max * 6                  # live z (f32 acc + bf16 operand)
                + (cin + cout) * 6)            # live x / o copies
    budget = 12 * 1024 * 1024                  # fits v5e's 16 MiB default scope
    tm_cap = max(_LANE, (budget // per_lane) // _LANE * _LANE)

    # Target >= ~512 KiB of activation I/O per grid step.
    io_per_lane = max(1, cin * act_bytes + cout * out_bytes)
    tm_target = -(-(512 * 1024) // io_per_lane)
    tm_target = -(-tm_target // _LANE) * _LANE

    tm = min(hw_pad, tm_cap, tm_target)
    tm = max(_LANE, tm // _LANE * _LANE)

    # Megacore: guarantee >= 2 independent grid steps when the data allows it.
    if N * pl.cdiv(HW, tm) < 2 and hw_pad >= 2 * _LANE:
        tm = max(_LANE, (hw_pad // 2) // _LANE * _LANE)
    return tm


def cell_pallas(x3, weights, meta):
    """x3: (N, Cin, HW) channel-major activations.  Returns (N, Cout, HW)."""
    N, cin, HW = x3.shape
    cout = meta[-1].out_chn
    mid_max = max(m.mid_chn for m in meta)
    act_bytes = jnp.dtype(x3.dtype).itemsize
    tm = _choose_row_tile(N, HW, cin, cout, mid_max, act_bytes, act_bytes)
    grid = (N, pl.cdiv(HW, tm))

    in_specs = [pl.BlockSpec((None, cin, tm), lambda n, i: (n, 0, i))]
    for w in weights:
        # Grid-invariant weights: constant index_map -> fetched once, resident.
        in_specs.append(pl.BlockSpec(w.shape, lambda n, i: (0, 0)))

    return pl.pallas_call(
        partial(_cell_kernel, meta=meta),
        out_shape=jax.ShapeDtypeStruct((N, cout, HW), x3.dtype),
        grid_spec=pltpu.PrefetchScalarGridSpec(
            num_scalar_prefetch=0,
            grid=grid,
            in_specs=in_specs,
            out_specs=pl.BlockSpec((None, cout, tm), lambda n, i: (n, 0, i)),
        ),
        compiler_params=pltpu.CompilerParams(
            dimension_semantics=("parallel", "parallel"),
            vmem_limit_bytes=48 * 1024 * 1024),   # headroom; < v7x 64 MiB physical
    )(x3, *weights)


# -----------------------------------------------------------------------------
# Module glue (params + jit-wrapped forward)
# -----------------------------------------------------------------------------
class Chromosome:
    def __init__(self, nlayers, expands, operations):
        self.nlayers = nlayers
        self.expands = list(expands)
        self.operations = tuple(operations)


def _init_conn(key, cin, cout):
    kw, kb = jax.random.split(key)
    w = (jax.random.normal(kw, (cout, cin), jnp.float32)
         * (1.0 / math.sqrt(cin))).astype(jnp.bfloat16)   # bf16 MXU operand
    b = jax.random.normal(kb, (cout, 1), jnp.float32) * 0.01
    return w, b


def build_cell_params(key, chromo, in_channels, out_channels, stride,
                      width_mult, depth_mult):
    nlayers = adjust_depth(chromo.nlayers, depth_mult)
    if nlayers > chromo.nlayers:
        for _ in range(nlayers - chromo.nlayers):
            chromo.expands.append(chromo.expands[-1])
    in_channels = _adjust_channels(in_channels, width_mult)
    out_channels = _adjust_channels(out_channels, width_mult)

    weights = []
    meta = []
    keys = jax.random.split(key, nlayers)
    for i in range(nlayers):
        if i > 0:
            in_channels = out_channels
            stride = 1
        mid_chn = _adjust_channels(in_channels, chromo.expands[i])
        use_res = (in_channels == out_channels) and (stride == 1)
        residual = use_res and (chromo.operations[2] != 0)
        k1, k2, k3 = jax.random.split(keys[i], 3)
        w1, b1 = _init_conn(k1, in_channels, mid_chn)      # block1: expand (ReLU)
        w3, b3 = _init_conn(k3, mid_chn, out_channels)     # block3: project (linear)
        weights += [w1, b1, w3, b3]
        if residual:
            w2, b2 = _init_conn(k2, in_channels, out_channels)  # block2
            weights += [w2, b2]
        meta.append(BlockMeta(in_channels, mid_chn, out_channels, stride, residual))
    return tuple(weights), tuple(meta)


@partial(jax.jit, static_argnums=(2,))
def cell_forward(x_nchw, weights, meta):
    s = meta[0].stride
    if s > 1:
        x_nchw = x_nchw[:, :, ::s, ::s]   # 1x1 conv stride == spatial subsample
    N, C, H, W = x_nchw.shape
    # Zero-copy: (N, C, H, W) -> (N, sublane=C, lane=H*W); no transpose passes.
    x3 = x_nchw.reshape(N, C, H * W)
    o3 = cell_pallas(x3, weights, meta)
    cout = meta[-1].out_chn
    return o3.reshape(N, cout, H, W)      # zero-copy back to NCHW


def _cell_reference(x_nchw, weights, meta):
    """Pure-JAX reference for correctness checking (uses the same bf16 weights)."""
    s = meta[0].stride
    if s > 1:
        x_nchw = x_nchw[:, :, ::s, ::s]
    N, C, H, W = x_nchw.shape
    x = jnp.transpose(x_nchw, (1, 0, 2, 3)).reshape(C, -1).astype(jnp.float32)
    idx = 0
    for m in meta:
        w1, b1, w3, b3 = weights[idx:idx + 4]
        idx += 4
        z = jnp.maximum(w1.astype(jnp.float32) @ x + b1, 0.0)
        o = w3.astype(jnp.float32) @ z + b3
        if m.residual:
            w2, b2 = weights[idx:idx + 2]
            idx += 2
            o = o + w2.astype(jnp.float32) @ x + b2
        x = o
    cout = meta[-1].out_chn
    return jnp.transpose(x.reshape(cout, N, H, W), (1, 0, 2, 3))


# -----------------------------------------------------------------------------
if __name__ == "__main__":
    key = jax.random.PRNGKey(0)
    k_x, k_params = jax.random.split(key)

    # Small, module-consistent config (channels adjusted to multiples of 8).
    chromo = Chromosome(nlayers=2, expands=[2, 2], operations=(1, 1, 1))
    in_channels, out_channels = 8, 8
    stride, width_mult, depth_mult = 1, 1.0, 1.0

    weights, meta = build_cell_params(
        k_params, chromo, in_channels, out_channels, stride, width_mult, depth_mult)

    # x in PyTorch NCHW convention: (batch=2, C=8, H=16, W=16)
    cin = meta[0].in_chn
    x = jax.random.normal(k_x, (2, cin, 16, 16), jnp.float32)

    out = cell_forward(x, weights, meta)
    out = jax.block_until_ready(out)

    assert out.shape == (2, meta[-1].out_chn, 16, 16), out.shape
    ref = _cell_reference(x, weights, meta)
    assert bool(jnp.all(jnp.isfinite(out)))
    assert bool(jnp.allclose(out, ref, atol=1e-1, rtol=1e-1)), \
        float(jnp.max(jnp.abs(out - ref)))
    print("KERNEL_OK")
</pallas_src>

<mosaic_0001>
module attributes {stable_mosaic.version = 11 : i64} {
  func.func @_cell_kernel(%arg0: i32, %arg1: i32, %arg2: memref<1x8x256xf32, #tpu.memory_space<vmem>>, %arg3: memref<16x8xbf16, #tpu.memory_space<vmem>>, %arg4: memref<16x1xf32, #tpu.memory_space<vmem>>, %arg5: memref<8x16xbf16, #tpu.memory_space<vmem>>, %arg6: memref<8x1xf32, #tpu.memory_space<vmem>>, %arg7: memref<8x8xbf16, #tpu.memory_space<vmem>>, %arg8: memref<8x1xf32, #tpu.memory_space<vmem>>, %arg9: memref<16x8xbf16, #tpu.memory_space<vmem>>, %arg10: memref<16x1xf32, #tpu.memory_space<vmem>>, %arg11: memref<8x16xbf16, #tpu.memory_space<vmem>>, %arg12: memref<8x1xf32, #tpu.memory_space<vmem>>, %arg13: memref<8x8xbf16, #tpu.memory_space<vmem>>, %arg14: memref<8x1xf32, #tpu.memory_space<vmem>>, %arg15: memref<1x8x256xf32, #tpu.memory_space<vmem>>) attributes {dimension_semantics = [#tpu.dimension_semantics<parallel>, #tpu.dimension_semantics<parallel>], iteration_bounds = array<i64: 2, 1>, scalar_prefetch = 0 : i64, scratch_operands = 0 : i64, tpu.core_type = #tpu.core_type<tc>, window_params = [{transform_indices = @transform_0, window_bounds = array<i64: 1, 8, 256>}, {pipeline_mode = #tpu.pipeline_mode<synchronous>, transform_indices = @transform_1, window_bounds = array<i64: 16, 8>}, {pipeline_mode = #tpu.pipeline_mode<synchronous>, transform_indices = @transform_2, window_bounds = array<i64: 16, 1>}, {pipeline_mode = #tpu.pipeline_mode<synchronous>, transform_indices = @transform_3, window_bounds = array<i64: 8, 16>}, {pipeline_mode = #tpu.pipeline_mode<synchronous>, transform_indices = @transform_4, window_bounds = array<i64: 8, 1>}, {pipeline_mode = #tpu.pipeline_mode<synchronous>, transform_indices = @transform_5, window_bounds = array<i64: 8, 8>}, {pipeline_mode = #tpu.pipeline_mode<synchronous>, transform_indices = @transform_6, window_bounds = array<i64: 8, 1>}, {pipeline_mode = #tpu.pipeline_mode<synchronous>, transform_indices = @transform_7, window_bounds = array<i64: 16, 8>}, {pipeline_mode = #tpu.pipeline_mode<synchronous>, transform_indices = @transform_8, window_bounds = array<i64: 16, 1>}, {pipeline_mode = #tpu.pipeline_mode<synchronous>, transform_indices = @transform_9, window_bounds = array<i64: 8, 16>}, {pipeline_mode = #tpu.pipeline_mode<synchronous>, transform_indices = @transform_10, window_bounds = array<i64: 8, 1>}, {pipeline_mode = #tpu.pipeline_mode<synchronous>, transform_indices = @transform_11, window_bounds = array<i64: 8, 8>}, {pipeline_mode = #tpu.pipeline_mode<synchronous>, transform_indices = @transform_12, window_bounds = array<i64: 8, 1>}, {transform_indices = @transform_13, window_bounds = array<i64: 1, 8, 256>}]} {
    %c0 = arith.constant 0 : index
    %c0_0 = arith.constant 0 : index
    %c0_1 = arith.constant 0 : index
    %0 = vector.load %arg2[%c0, %c0_0, %c0_1] : memref<1x8x256xf32, #tpu.memory_space<vmem>>, vector<1x8x256xf32>
    %1 = vector.shape_cast %0 : vector<1x8x256xf32> to vector<8x256xf32>
    %2 = arith.truncf %1 : vector<8x256xf32> to vector<8x256xbf16>
    %c0_2 = arith.constant 0 : index
    %c0_3 = arith.constant 0 : index
    %3 = vector.load %arg3[%c0_2, %c0_3] : memref<16x8xbf16, #tpu.memory_space<vmem>>, vector<16x8xbf16>
    %c0_4 = arith.constant 0 : index
    %c0_5 = arith.constant 0 : index
    %4 = vector.load %arg4[%c0_4, %c0_5] : memref<16x1xf32, #tpu.memory_space<vmem>>, vector<16x1xf32>
    %c0_6 = arith.constant 0 : index
    %c0_7 = arith.constant 0 : index
    %5 = vector.load %arg5[%c0_6, %c0_7] : memref<8x16xbf16, #tpu.memory_space<vmem>>, vector<8x16xbf16>
    %c0_8 = arith.constant 0 : index
    %c0_9 = arith.constant 0 : index
    %6 = vector.load %arg6[%c0_8, %c0_9] : memref<8x1xf32, #tpu.memory_space<vmem>>, vector<8x1xf32>
    %cst = arith.constant dense<0.000000e+00> : vector<16x256xf32>
    %7 = tpu.matmul %3, %2, %cst {dimension_numbers = #tpu.dot_dimension_numbers<[1], [0], [0], [1], [0, 0, 1, 1], [], []>} : vector<16x8xbf16>, vector<8x256xbf16>, vector<16x256xf32> -> vector<16x256xf32>
    %8 = vector.broadcast %4 : vector<16x1xf32> to vector<16x256xf32>
    %9 = arith.addf %7, %8 : vector<16x256xf32>
    %cst_10 = arith.constant 0.000000e+00 : f32
    %10 = vector.broadcast %cst_10 : f32 to vector<16x256xf32>
    %11 = arith.maximumf %9, %10 : vector<16x256xf32>
    %12 = arith.truncf %11 : vector<16x256xf32> to vector<16x256xbf16>
    %cst_11 = arith.constant dense<0.000000e+00> : vector<8x256xf32>
    %13 = tpu.matmul %5, %12, %cst_11 {dimension_numbers = #tpu.dot_dimension_numbers<[1], [0], [0], [1], [0, 0, 1, 1], [], []>} : vector<8x16xbf16>, vector<16x256xbf16>, vector<8x256xf32> -> vector<8x256xf32>
    %14 = vector.broadcast %6 : vector<8x1xf32> to vector<8x256xf32>
    %15 = arith.addf %13, %14 : vector<8x256xf32>
    %c0_12 = arith.constant 0 : index
    %c0_13 = arith.constant 0 : index
    %16 = vector.load %arg7[%c0_12, %c0_13] : memref<8x8xbf16, #tpu.memory_space<vmem>>, vector<8x8xbf16>
    %c0_14 = arith.constant 0 : index
    %c0_15 = arith.constant 0 : index
    %17 = vector.load %arg8[%c0_14, %c0_15] : memref<8x1xf32, #tpu.memory_space<vmem>>, vector<8x1xf32>
    %cst_16 = arith.constant dense<0.000000e+00> : vector<8x256xf32>
    %18 = tpu.matmul %16, %2, %cst_16 {dimension_numbers = #tpu.dot_dimension_numbers<[1], [0], [0], [1], [0, 0, 1, 1], [], []>} : vector<8x8xbf16>, vector<8x256xbf16>, vector<8x256xf32> -> vector<8x256xf32>
    %19 = arith.addf %15, %18 : vector<8x256xf32>
    %20 = vector.broadcast %17 : vector<8x1xf32> to vector<8x256xf32>
    %21 = arith.addf %19, %20 : vector<8x256xf32>
    %22 = arith.truncf %21 : vector<8x256xf32> to vector<8x256xbf16>
    %c0_17 = arith.constant 0 : index
    %c0_18 = arith.constant 0 : index
    %23 = vector.load %arg9[%c0_17, %c0_18] : memref<16x8xbf16, #tpu.memory_space<vmem>>, vector<16x8xbf16>
    %c0_19 = arith.constant 0 : index
    %c0_20 = arith.constant 0 : index
    %24 = vector.load %arg10[%c0_19, %c0_20] : memref<16x1xf32, #tpu.memory_space<vmem>>, vector<16x1xf32>
    %c0_21 = arith.constant 0 : index
    %c0_22 = arith.constant 0 : index
    %25 = vector.load %arg11[%c0_21, %c0_22] : memref<8x16xbf16, #tpu.memory_space<vmem>>, vector<8x16xbf16>
    %c0_23 = arith.constant 0 : index
    %c0_24 = arith.constant 0 : index
    %26 = vector.load %arg12[%c0_23, %c0_24] : memref<8x1xf32, #tpu.memory_space<vmem>>, vector<8x1xf32>
    %cst_25 = arith.constant dense<0.000000e+00> : vector<16x256xf32>
    %27 = tpu.matmul %23, %22, %cst_25 {dimension_numbers = #tpu.dot_dimension_numbers<[1], [0], [0], [1], [0, 0, 1, 1], [], []>} : vector<16x8xbf16>, vector<8x256xbf16>, vector<16x256xf32> -> vector<16x256xf32>
    %28 = vector.broadcast %24 : vector<16x1xf32> to vector<16x256xf32>
    %29 = arith.addf %27, %28 : vector<16x256xf32>
    %cst_26 = arith.constant 0.000000e+00 : f32
    %30 = vector.broadcast %cst_26 : f32 to vector<16x256xf32>
    %31 = arith.maximumf %29, %30 : vector<16x256xf32>
    %32 = arith.truncf %31 : vector<16x256xf32> to vector<16x256xbf16>
    %cst_27 = arith.constant dense<0.000000e+00> : vector<8x256xf32>
    %33 = tpu.matmul %25, %32, %cst_27 {dimension_numbers = #tpu.dot_dimension_numbers<[1], [0], [0], [1], [0, 0, 1, 1], [], []>} : vector<8x16xbf16>, vector<16x256xbf16>, vector<8x256xf32> -> vector<8x256xf32>
    %34 = vector.broadcast %26 : vector<8x1xf32> to vector<8x256xf32>
    %35 = arith.addf %33, %34 : vector<8x256xf32>
    %c0_28 = arith.constant 0 : index
    %c0_29 = arith.constant 0 : index
    %36 = vector.load %arg13[%c0_28, %c0_29] : memref<8x8xbf16, #tpu.memory_space<vmem>>, vector<8x8xbf16>
    %c0_30 = arith.constant 0 : index
    %c0_31 = arith.constant 0 : index
    %37 = vector.load %arg14[%c0_30, %c0_31] : memref<8x1xf32, #tpu.memory_space<vmem>>, vector<8x1xf32>
    %cst_32 = arith.constant dense<0.000000e+00> : vector<8x256xf32>
    %38 = tpu.matmul %36, %22, %cst_32 {dimension_numbers = #tpu.dot_dimension_numbers<[1], [0], [0], [1], [0, 0, 1, 1], [], []>} : vector<8x8xbf16>, vector<8x256xbf16>, vector<8x256xf32> -> vector<8x256xf32>
    %39 = arith.addf %35, %38 : vector<8x256xf32>
    %40 = vector.broadcast %37 : vector<8x1xf32> to vector<8x256xf32>
    %41 = arith.addf %39, %40 : vector<8x256xf32>
    %c0_33 = arith.constant 0 : index
    %c0_34 = arith.constant 0 : index
    %c0_35 = arith.constant 0 : index
    %42 = vector.load %arg15[%c0_33, %c0_34, %c0_35] : memref<1x8x256xf32, #tpu.memory_space<vmem>>, vector<1x8x256xf32>
    %43 = vector.shape_cast %42 : vector<1x8x256xf32> to vector<8x256xf32>
    %44 = vector.shape_cast %41 : vector<8x256xf32> to vector<1x8x256xf32>
    tpu.vector_store %arg15[%c0_33, %c0_34, %c0_35], %44 {strides = array<i32>} : memref<1x8x256xf32, #tpu.memory_space<vmem>>, vector<1x8x256xf32>,
    return
  }
  func.func @transform_0(%arg0: i32, %arg1: i32) -> (i32, i32, i32) {
    %c0_i32 = arith.constant 0 : i32
    %c0_i32_0 = arith.constant 0 : i32
    return %arg0, %c0_i32, %arg1 : i32, i32, i32
  }
  func.func @transform_1(%arg0: i32, %arg1: i32) -> (i32, i32) {
    %c0_i32 = arith.constant 0 : i32
    %c0_i32_0 = arith.constant 0 : i32
    %c0_i32_1 = arith.constant 0 : i32
    return %c0_i32, %c0_i32_0 : i32, i32
  }
  func.func @transform_2(%arg0: i32, %arg1: i32) -> (i32, i32) {
    %c0_i32 = arith.constant 0 : i32
    %c0_i32_0 = arith.constant 0 : i32
    %c0_i32_1 = arith.constant 0 : i32
    return %c0_i32, %c0_i32_0 : i32, i32
  }
  func.func @transform_3(%arg0: i32, %arg1: i32) -> (i32, i32) {
    %c0_i32 = arith.constant 0 : i32
    %c0_i32_0 = arith.constant 0 : i32
    %c0_i32_1 = arith.constant 0 : i32
    return %c0_i32, %c0_i32_0 : i32, i32
  }
  func.func @transform_4(%arg0: i32, %arg1: i32) -> (i32, i32) {
    %c0_i32 = arith.constant 0 : i32
    %c0_i32_0 = arith.constant 0 : i32
    %c0_i32_1 = arith.constant 0 : i32
    return %c0_i32, %c0_i32_0 : i32, i32
  }
  func.func @transform_5(%arg0: i32, %arg1: i32) -> (i32, i32) {
    %c0_i32 = arith.constant 0 : i32
    %c0_i32_0 = arith.constant 0 : i32
    %c0_i32_1 = arith.constant 0 : i32
    return %c0_i32, %c0_i32_0 : i32, i32
  }
  func.func @transform_6(%arg0: i32, %arg1: i32) -> (i32, i32) {
    %c0_i32 = arith.constant 0 : i32
    %c0_i32_0 = arith.constant 0 : i32
    %c0_i32_1 = arith.constant 0 : i32
    return %c0_i32, %c0_i32_0 : i32, i32
  }
  func.func @transform_7(%arg0: i32, %arg1: i32) -> (i32, i32) {
    %c0_i32 = arith.constant 0 : i32
    %c0_i32_0 = arith.constant 0 : i32
    %c0_i32_1 = arith.constant 0 : i32
    return %c0_i32, %c0_i32_0 : i32, i32
  }
  func.func @transform_8(%arg0: i32, %arg1: i32) -> (i32, i32) {
    %c0_i32 = arith.constant 0 : i32
    %c0_i32_0 = arith.constant 0 : i32
    %c0_i32_1 = arith.constant 0 : i32
    return %c0_i32, %c0_i32_0 : i32, i32
  }
  func.func @transform_9(%arg0: i32, %arg1: i32) -> (i32, i32) {
    %c0_i32 = arith.constant 0 : i32
    %c0_i32_0 = arith.constant 0 : i32
    %c0_i32_1 = arith.constant 0 : i32
    return %c0_i32, %c0_i32_0 : i32, i32
  }
  func.func @transform_10(%arg0: i32, %arg1: i32) -> (i32, i32) {
    %c0_i32 = arith.constant 0 : i32
    %c0_i32_0 = arith.constant 0 : i32
    %c0_i32_1 = arith.constant 0 : i32
    return %c0_i32, %c0_i32_0 : i32, i32
  }
  func.func @transform_11(%arg0: i32, %arg1: i32) -> (i32, i32) {
    %c0_i32 = arith.constant 0 : i32
    %c0_i32_0 = arith.constant 0 : i32
    %c0_i32_1 = arith.constant 0 : i32
    return %c0_i32, %c0_i32_0 : i32, i32
  }
  func.func @transform_12(%arg0: i32, %arg1: i32) -> (i32, i32) {
    %c0_i32 = arith.constant 0 : i32
    %c0_i32_0 = arith.constant 0 : i32
    %c0_i32_1 = arith.constant 0 : i32
    return %c0_i32, %c0_i32_0 : i32, i32
  }
  func.func @transform_13(%arg0: i32, %arg1: i32) -> (i32, i32, i32) {
    %c0_i32 = arith.constant 0 : i32
    %c0_i32_0 = arith.constant 0 : i32
    return %arg0, %c0_i32, %arg1 : i32, i32, i32
  }
}

</mosaic_0001>

<llo_original>
// kernel: cell_forward.1
$region0: #{cell_forward.1}
  #allocation0 [shape = 'u32[]', space=smem, size = 0x4, offset = 0x4, fixed_abs, tag = 'smem constant byte address 0x4 - core index']
  #allocation1 [shape = 'u32[72,128]{1,0:T(1,128)}', space=vmem, size = 0x9000, scoped, tag = 'internal scratch']
  %s0 = inlined_call_operand.vmem [shape: f32[2,8,256], index: 0, kind: input, shape index: {}]
  %s1 = inlined_call_operand.vmem [shape: bf16[16,8], index: 1, kind: input, shape index: {}]
  %s2 = inlined_call_operand.vmem [shape: f32[16,1], index: 2, kind: input, shape index: {}]
  %s3 = inlined_call_operand.vmem [shape: bf16[8,16], index: 3, kind: input, shape index: {}]
  %s4 = inlined_call_operand.vmem [shape: f32[8,1], index: 4, kind: input, shape index: {}]
  %s5 = inlined_call_operand.vmem [shape: bf16[8,8], index: 5, kind: input, shape index: {}]
  %s6 = inlined_call_operand.vmem [shape: f32[8,1], index: 6, kind: input, shape index: {}]
  %s7 = inlined_call_operand.vmem [shape: bf16[16,8], index: 7, kind: input, shape index: {}]
  %s8 = inlined_call_operand.vmem [shape: f32[16,1], index: 8, kind: input, shape index: {}]
  %s9 = inlined_call_operand.vmem [shape: bf16[8,16], index: 9, kind: input, shape index: {}]
  %s10 = inlined_call_operand.vmem [shape: f32[8,1], index: 10, kind: input, shape index: {}]
  %s11 = inlined_call_operand.vmem [shape: bf16[8,8], index: 11, kind: input, shape index: {}]
  %s12 = inlined_call_operand.vmem [shape: f32[8,1], index: 12, kind: input, shape index: {}]
  %s13 = inlined_call_operand.vmem [shape: f32[2,8,256], index: 13, kind: output, shape index: {}]
  %s14 = sld [smem:[#allocation0]]
  $region85: #{cell_forward.1} parent=0
    _
  %s16 = ssub.s32 1, %s14
  %s17 = scalar_select 0, %s16, %s14
  loop: start=0, step=1, limit=4
  $region2: #{cell_forward.1} parent=0 // loop_pre_header
    _
  $region3: #{cell_forward.1} parent=0 // loop_header
    %s19 = sphi 0, %s23
    %p20 = scmp.ge.s32.totalorder %s19, 4
    %s26 = sphi 0, %s38
    %s27 = sphi 0, %s34
    %s28 = sphi 0, %s26
    %s29 = sphi 0, %s27
    %s30 = sphi 0, %s28
    %s31 = sphi 0, %s29
    %s43 = sphi 0, %s45
    %s46 = sphi 0, %s43
    %s47 = sphi 0, %s46
    %s63 = sphi 0, %s47
    %s67 = sphi 0, %s67
    %s69 = sphi 0, %s67
    %s70 = sphi 0, %s69
    %s84 = sphi 0, %s70
    %s88 = sphi 0, %s88
    %s90 = sphi 0, %s88
    %s91 = sphi 0, %s90
    %s105 = sphi 0, %s91
    %s109 = sphi 0, %s109
    %s111 = sphi 0, %s109
    %s112 = sphi 0, %s111
    %s126 = sphi 0, %s112
    %s130 = sphi 0, %s130
    %s132 = sphi 0, %s130
    %s133 = sphi 0, %s132
    %s147 = sphi 0, %s133
    %s151 = sphi 0, %s151
    %s153 = sphi 0, %s151
    %s154 = sphi 0, %s153
    %s168 = sphi 0, %s154
    %s172 = sphi 0, %s172
    %s174 = sphi 0, %s172
    %s175 = sphi 0, %s174
    %s189 = sphi 0, %s175
    %s193 = sphi 0, %s193
    %s195 = sphi 0, %s193
    %s196 = sphi 0, %s195
    %s210 = sphi 0, %s196
    %s214 = sphi 0, %s214
    %s216 = sphi 0, %s214
    %s217 = sphi 0, %s216
    %s231 = sphi 0, %s217
    %s235 = sphi 0, %s235
    %s237 = sphi 0, %s235
    %s238 = sphi 0, %s237
    %s252 = sphi 0, %s238
    %s256 = sphi 0, %s256
    %s258 = sphi 0, %s256
    %s259 = sphi 0, %s258
    %s273 = sphi 0, %s259
    %s277 = sphi 0, %s277
    %s279 = sphi 0, %s277
    %s280 = sphi 0, %s279
    %s294 = sphi 0, %s280
    %s298 = sphi 0, %s298
    %s300 = sphi 0, %s298
    %s301 = sphi 0, %s300
    %s315 = sphi 0, %s301
    %s323 = sphi 0, %s325
    %s326 = sphi 0, %s323
    %s327 = sphi 0, %s326
    %s343 = sphi 0, %s327
  $region4: #{cell_forward.1} parent=0 // loop_header_branch
    %22 = sbr.rel (%p20) target = $region8
  $region5: #{cell_forward.1} parent=0 // loop_body
    %s24 = ssub.s32 %s19, 1
    %s25 = ssub.s32 %s19, 2
    %s32 = sadd.s32 1, %s27
    %p33 = scmp.ge.s32.totalorder %s32, 1
    %s34 = scalar_select %p33, 0, %s32
    %s35 = sadd.s32 1, %s26
    %s36 = scalar_select %p33, %s35, %s26
    %p37 = scmp.ge.s32.totalorder %s36, 2
    %s38 = scalar_select %p37, 0, %s36
    %s39 = ssub.s32 %s26, %s38
    %s40 = ssub.s32 %s27, %s34
    %s41 = sor.u32 %s39, %s40
    %p42 = scmp.eq.s32.totalorder %s41, 0
    %s44 = sadd.s32 %s43, 1
    %s45 = scalar_select %p42, %s43, %s44
    %p48 = pneg %p42
    %p49 = scmp.eq.s32.totalorder %s19, 1
    %p50 = por %p48, %p49
    %p51 = scmp.ne.s32.totalorder %s43, %s46
    %p52 = scmp.eq.s32.totalorder %s19, 0
    %p53 = por %p51, %p52
    %p54 = scmp.ne.s32.totalorder %s43, %s46
    %p55 = scmp.eq.s32.totalorder %s24, 1
    %p56 = por %p54, %p55
    %p57 = scmp.ne.s32.totalorder %s46, %s47
    %p58 = scmp.eq.s32.totalorder %s24, 0
    %p59 = por %p57, %p58
    %p60 = scmp.ne.s32.totalorder %s46, %s47
    %p61 = scmp.eq.s32.totalorder %s25, 1
    %p62 = por %p60, %p61
    %p64 = scmp.ne.s32.totalorder %s47, %s63
    %p65 = scmp.eq.s32.totalorder %s25, 0
    %p66 = por %p64, %p65
    %s68 = sadd.s32 %s67, 1
    %p71 = scmp.eq.s32.totalorder %s19, 1
    %p72 = scmp.ne.s32.totalorder %s67, %s69
    %p73 = scmp.eq.s32.totalorder %s19, 0
    %p74 = por %p72, %p73
    %p75 = scmp.ne.s32.totalorder %s67, %s69
    %p76 = scmp.eq.s32.totalorder %s24, 1
    %p77 = por %p75, %p76
    %p78 = scmp.ne.s32.totalorder %s69, %s70
    %p79 = scmp.eq.s32.totalorder %s24, 0
    %p80 = por %p78, %p79
    %p81 = scmp.ne.s32.totalorder %s69, %s70
    %p82 = scmp.eq.s32.totalorder %s25, 1
    %p83 = por %p81, %p82
    %p85 = scmp.ne.s32.totalorder %s70, %s84
    %p86 = scmp.eq.s32.totalorder %s25, 0
    %p87 = por %p85, %p86
    %s89 = sadd.s32 %s88, 1
    %p92 = scmp.eq.s32.totalorder %s19, 1
    %p93 = scmp.ne.s32.totalorder %s88, %s90
    %p94 = scmp.eq.s32.totalorder %s19, 0
    %p95 = por %p93, %p94
    %p96 = scmp.ne.s32.totalorder %s88, %s90
    %p97 = scmp.eq.s32.totalorder %s24, 1
    %p98 = por %p96, %p97
    %p99 = scmp.ne.s32.totalorder %s90, %s91
    %p100 = scmp.eq.s32.totalorder %s24, 0
    %p101 = por %p99, %p100
    %p102 = scmp.ne.s32.totalorder %s90, %s91
    %p103 = scmp.eq.s32.totalorder %s25, 1
    %p104 = por %p102, %p103
    %p106 = scmp.ne.s32.totalorder %s91, %s105
    %p107 = scmp.eq.s32.totalorder %s25, 0
    %p108 = por %p106, %p107
    %s110 = sadd.s32 %s109, 1
    %p113 = scmp.eq.s32.totalorder %s19, 1
    %p114 = scmp.ne.s32.totalorder %s109, %s111
    %p115 = scmp.eq.s32.totalorder %s19, 0
    %p116 = por %p114, %p115
    %p117 = scmp.ne.s32.totalorder %s109, %s111
    %p118 = scmp.eq.s32.totalorder %s24, 1
    %p119 = por %p117, %p118
    %p120 = scmp.ne.s32.totalorder %s111, %s112
    %p121 = scmp.eq.s32.totalorder %s24, 0
    %p122 = por %p120, %p121
    %p123 = scmp.ne.s32.totalorder %s111, %s112
    %p124 = scmp.eq.s32.totalorder %s25, 1
    %p125 = por %p123, %p124
    %p127 = scmp.ne.s32.totalorder %s112, %s126
    %p128 = scmp.eq.s32.totalorder %s25, 0
    %p129 = por %p127, %p128
    %s131 = sadd.s32 %s130, 1
    %p134 = scmp.eq.s32.totalorder %s19, 1
    %p135 = scmp.ne.s32.totalorder %s130, %s132
    %p136 = scmp.eq.s32.totalorder %s19, 0
    %p137 = por %p135, %p136
    %p138 = scmp.ne.s32.totalorder %s130, %s132
    %p139 = scmp.eq.s32.totalorder %s24, 1
    %p140 = por %p138, %p139
    %p141 = scmp.ne.s32.totalorder %s132, %s133
    %p142 = scmp.eq.s32.totalorder %s24, 0
    %p143 = por %p141, %p142
    %p144 = scmp.ne.s32.totalorder %s132, %s133
    %p145 = scmp.eq.s32.totalorder %s25, 1
    %p146 = por %p144, %p145
    %p148 = scmp.ne.s32.totalorder %s133, %s147
    %p149 = scmp.eq.s32.totalorder %s25, 0
    %p150 = por %p148, %p149
    %s152 = sadd.s32 %s151, 1
    %p155 = scmp.eq.s32.totalorder %s19, 1
    %p156 = scmp.ne.s32.totalorder %s151, %s153
    %p157 = scmp.eq.s32.totalorder %s19, 0
    %p158 = por %p156, %p157
    %p159 = scmp.ne.s32.totalorder %s151, %s153
    %p160 = scmp.eq.s32.totalorder %s24, 1
    %p161 = por %p159, %p160
    %p162 = scmp.ne.s32.totalorder %s153, %s154
    %p163 = scmp.eq.s32.totalorder %s24, 0
    %p164 = por %p162, %p163
    %p165 = scmp.ne.s32.totalorder %s153, %s154
    %p166 = scmp.eq.s32.totalorder %s25, 1
    %p167 = por %p165, %p166
    %p169 = scmp.ne.s32.totalorder %s154, %s168
    %p170 = scmp.eq.s32.totalorder %s25, 0
    %p171 = por %p169, %p170
    %s173 = sadd.s32 %s172, 1
    %p176 = scmp.eq.s32.totalorder %s19, 1
    %p177 = scmp.ne.s32.totalorder %s172, %s174
    %p178 = scmp.eq.s32.totalorder %s19, 0
    %p179 = por %p177, %p178
    %p180 = scmp.ne.s32.totalorder %s172, %s174
    %p181 = scmp.eq.s32.totalorder %s24, 1
    %p182 = por %p180, %p181
    %p183 = scmp.ne.s32.totalorder %s174, %s175
    %p184 = scmp.eq.s32.totalorder %s24, 0
    %p185 = por %p183, %p184
    %p186 = scmp.ne.s32.totalorder %s174, %s175
    %p187 = scmp.eq.s32.totalorder %s25, 1
    %p188 = por %p186, %p187
    %p190 = scmp.ne.s32.totalorder %s175, %s189
    %p191 = scmp.eq.s32.totalorder %s25, 0
    %p192 = por %p190, %p191
    %s194 = sadd.s32 %s193, 1
    %p197 = scmp.eq.s32.totalorder %s19, 1
    %p198 = scmp.ne.s32.totalorder %s193, %s195
    %p199 = scmp.eq.s32.totalorder %s19, 0
    %p200 = por %p198, %p199
    %p201 = scmp.ne.s32.totalorder %s193, %s195
    %p202 = scmp.eq.s32.totalorder %s24, 1
    %p203 = por %p201, %p202
    %p204 = scmp.ne.s32.totalorder %s195, %s196
    %p205 = scmp.eq.s32.totalorder %s24, 0
    %p206 = por %p204, %p205
    %p207 = scmp.ne.s32.totalorder %s195, %s196
    %p208 = scmp.eq.s32.totalorder %s25, 1
    %p209 = por %p207, %p208
    %p211 = scmp.ne.s32.totalorder %s196, %s210
    %p212 = scmp.eq.s32.totalorder %s25, 0
    %p213 = por %p211, %p212
    %s215 = sadd.s32 %s214, 1
    %p218 = scmp.eq.s32.totalorder %s19, 1
    %p219 = scmp.ne.s32.totalorder %s214, %s216
    %p220 = scmp.eq.s32.totalorder %s19, 0
    %p221 = por %p219, %p220
    %p222 = scmp.ne.s32.totalorder %s214, %s216
    %p223 = scmp.eq.s32.totalorder %s24, 1
    %p224 = por %p222, %p223
    %p225 = scmp.ne.s32.totalorder %s216, %s217
    %p226 = scmp.eq.s32.totalorder %s24, 0
    %p227 = por %p225, %p226
    %p228 = scmp.ne.s32.totalorder %s216, %s217
    %p229 = scmp.eq.s32.totalorder %s25, 1
    %p230 = por %p228, %p229
    %p232 = scmp.ne.s32.totalorder %s217, %s231
    %p233 = scmp.eq.s32.totalorder %s25, 0
    %p234 = por %p232, %p233
    %s236 = sadd.s32 %s235, 1
    %p239 = scmp.eq.s32.totalorder %s19, 1
    %p240 = scmp.ne.s32.totalorder %s235, %s237
    %p241 = scmp.eq.s32.totalorder %s19, 0
    %p242 = por %p240, %p241
    %p243 = scmp.ne.s32.totalorder %s235, %s237
    %p244 = scmp.eq.s32.totalorder %s24, 1
    %p245 = por %p243, %p244
    %p246 = scmp.ne.s32.totalorder %s237, %s238
    %p247 = scmp.eq.s32.totalorder %s24, 0
    %p248 = por %p246, %p247
    %p249 = scmp.ne.s32.totalorder %s237, %s238
    %p250 = scmp.eq.s32.totalorder %s25, 1
    %p251 = por %p249, %p250
    %p253 = scmp.ne.s32.totalorder %s238, %s252
    %p254 = scmp.eq.s32.totalorder %s25, 0
    %p255 = por %p253, %p254
    %s257 = sadd.s32 %s256, 1
    %p260 = scmp.eq.s32.totalorder %s19, 1
    %p261 = scmp.ne.s32.totalorder %s256, %s258
    %p262 = scmp.eq.s32.totalorder %s19, 0
    %p263 = por %p261, %p262
    %p264 = scmp.ne.s32.totalorder %s256, %s258
    %p265 = scmp.eq.s32.totalorder %s24, 1
    %p266 = por %p264, %p265
    %p267 = scmp.ne.s32.totalorder %s258, %s259
    %p268 = scmp.eq.s32.totalorder %s24, 0
    %p269 = por %p267, %p268
    %p270 = scmp.ne.s32.totalorder %s258, %s259
    %p271 = scmp.eq.s32.totalorder %s25, 1
    %p272 = por %p270, %p271
    %p274 = scmp.ne.s32.totalorder %s259, %s273
    %p275 = scmp.eq.s32.totalorder %s25, 0
    %p276 = por %p274, %p275
    %s278 = sadd.s32 %s277, 1
    %p281 = scmp.eq.s32.totalorder %s19, 1
    %p282 = scmp.ne.s32.totalorder %s277, %s279
    %p283 = scmp.eq.s32.totalorder %s19, 0
    %p284 = por %p282, %p283
    %p285 = scmp.ne.s32.totalorder %s277, %s279
    %p286 = scmp.eq.s32.totalorder %s24, 1
    %p287 = por %p285, %p286
    %p288 = scmp.ne.s32.totalorder %s279, %s280
    %p289 = scmp.eq.s32.totalorder %s24, 0
    %p290 = por %p288, %p289
    %p291 = scmp.ne.s32.totalorder %s279, %s280
    %p292 = scmp.eq.s32.totalorder %s25, 1
    %p293 = por %p291, %p292
    %p295 = scmp.ne.s32.totalorder %s280, %s294
    %p296 = scmp.eq.s32.totalorder %s25, 0
    %p297 = por %p295, %p296
    %s299 = sadd.s32 %s298, 1
    %p302 = scmp.eq.s32.totalorder %s19, 1
    %p303 = scmp.ne.s32.totalorder %s298, %s300
    %p304 = scmp.eq.s32.totalorder %s19, 0
    %p305 = por %p303, %p304
    %p306 = scmp.ne.s32.totalorder %s298, %s300
    %p307 = scmp.eq.s32.totalorder %s24, 1
    %p308 = por %p306, %p307
    %p309 = scmp.ne.s32.totalorder %s300, %s301
    %p310 = scmp.eq.s32.totalorder %s24, 0
    %p311 = por %p309, %p310
    %p312 = scmp.ne.s32.totalorder %s300, %s301
    %p313 = scmp.eq.s32.totalorder %s25, 1
    %p314 = por %p312, %p313
    %p316 = scmp.ne.s32.totalorder %s301, %s315
    %p317 = scmp.eq.s32.totalorder %s25, 0
    %p318 = por %p316, %p317
    %s319 = ssub.s32 %s26, %s38
    %s320 = ssub.s32 %s27, %s34
    %s321 = sor.u32 %s319, %s320
    %p322 = scmp.eq.s32.totalorder %s321, 0
    %s324 = sadd.s32 %s323, 1
    %s325 = scalar_select %p322, %s323, %s324
    %p328 = pneg %p322
    %p329 = scmp.eq.s32.totalorder %s19, 1
    %p330 = por %p328, %p329
    %p331 = scmp.ne.s32.totalorder %s323, %s326
    %p332 = scmp.eq.s32.totalorder %s19, 0
    %p333 = por %p331, %p332
    %p334 = scmp.ne.s32.totalorder %s323, %s326
    %p335 = scmp.eq.s32.totalorder %s24, 1
    %p336 = por %p334, %p335
    %p337 = scmp.ne.s32.totalorder %s326, %s327
    %p338 = scmp.eq.s32.totalorder %s24, 0
    %p339 = por %p337, %p338
    %p340 = scmp.ne.s32.totalorder %s326, %s327
    %p341 = scmp.eq.s32.totalorder %s25, 1
    %p342 = por %p340, %p341
    %p344 = scmp.ne.s32.totalorder %s327, %s343
    %p345 = scmp.eq.s32.totalorder %s25, 0
    %p346 = por %p344, %p345
    %p347 = scmp.le.s32.totalorder 1, %s19
    %p348 = scmp.lt.s32.totalorder %s19, 3
    %p349 = pnand %p347, %p348
    %p350 = pneg %p349
    // Predicated region
    $region9: #{cell_forward.1} parent=5 // pred_check
      _
    $region10: #{cell_forward.1} parent=5 // pred_check_branch
      %352 = sbr.rel (%p349) target = $region12
    $region11: #{cell_forward.1} parent=5 // pred_region
      %s353 = ssub.s32 %s19, 1
      // Predicated region
      $region13: #{cell_forward.1} parent=11 // pred_check
        %p354 = pneg %p80
      $region14: #{cell_forward.1} parent=11 // pred_check_branch
        %356 = sbr.rel (%p354) target = $region16
      $region15: #{cell_forward.1} parent=11 // pred_region
        _
      $region16: #{cell_forward.1} parent=11 // pred_fallthru
        _
      // Predicated region
      $region17: #{cell_forward.1} parent=11 // pred_check
        %p357 = pneg %p101
      $region18: #{cell_forward.1} parent=11 // pred_check_branch
        %359 = sbr.rel (%p357) target = $region20
      $region19: #{cell_forward.1} parent=11 // pred_region
        _
      $region20: #{cell_forward.1} parent=11 // pred_fallthru
        _
      // Predicated region
      $region21: #{cell_forward.1} parent=11 // pred_check
        %p360 = pneg %p122
      $region22: #{cell_forward.1} parent=11 // pred_check_branch
        %362 = sbr.rel (%p360) target = $region24
      $region23: #{cell_forward.1} parent=11 // pred_region
        _
      $region24: #{cell_forward.1} parent=11 // pred_fallthru
        _
      // Predicated region
      $region25: #{cell_forward.1} parent=11 // pred_check
        %p363 = pneg %p143
      $region26: #{cell_forward.1} parent=11 // pred_check_branch
        %365 = sbr.rel (%p363) target = $region28
      $region27: #{cell_forward.1} parent=11 // pred_region
        _
      $region28: #{cell_forward.1} parent=11 // pred_fallthru
        _
      // Predicated region
      $region29: #{cell_forward.1} parent=11 // pred_check
        %p366 = pneg %p164
      $region30: #{cell_forward.1} parent=11 // pred_check_branch
        %368 = sbr.rel (%p366) target = $region32
      $region31: #{cell_forward.1} parent=11 // pred_region
        _
      $region32: #{cell_forward.1} parent=11 // pred_fallthru
        _
      // Predicated region
      $region33: #{cell_forward.1} parent=11 // pred_check
        %p369 = pneg %p185
      $region34: #{cell_forward.1} parent=11 // pred_check_branch
        %371 = sbr.rel (%p369) target = $region36
      $region35: #{cell_forward.1} parent=11 // pred_region
        _
      $region36: #{cell_forward.1} parent=11 // pred_fallthru
        _
      // Predicated region
      $region37: #{cell_forward.1} parent=11 // pred_check
        %p372 = pneg %p206
      $region38: #{cell_forward.1} parent=11 // pred_check_branch
        %374 = sbr.rel (%p372) target = $region40
      $region39: #{cell_forward.1} parent=11 // pred_region
        _
      $region40: #{cell_forward.1} parent=11 // pred_fallthru
        _
      // Predicated region
      $region41: #{cell_forward.1} parent=11 // pred_check
        %p375 = pneg %p227
      $region42: #{cell_forward.1} parent=11 // pred_check_branch
        %377 = sbr.rel (%p375) target = $region44
      $region43: #{cell_forward.1} parent=11 // pred_region
        _
      $region44: #{cell_forward.1} parent=11 // pred_fallthru
        _
      // Predicated region
      $region45: #{cell_forward.1} parent=11 // pred_check
        %p378 = pneg %p248
      $region46: #{cell_forward.1} parent=11 // pred_check_branch
        %380 = sbr.rel (%p378) target = $region48
      $region47: #{cell_forward.1} parent=11 // pred_region
        _
      $region48: #{cell_forward.1} parent=11 // pred_fallthru
        _
      // Predicated region
      $region49: #{cell_forward.1} parent=11 // pred_check
        %p381 = pneg %p269
      $region50: #{cell_forward.1} parent=11 // pred_check_branch
        %383 = sbr.rel (%p381) target = $region52
      $region51: #{cell_forward.1} parent=11 // pred_region
        _
      $region52: #{cell_forward.1} parent=11 // pred_fallthru
        _
      // Predicated region
      $region53: #{cell_forward.1} parent=11 // pred_check
        %p384 = pneg %p290
      $region54: #{cell_forward.1} parent=11 // pred_check_branch
        %386 = sbr.rel (%p384) target = $region56
      $region55: #{cell_forward.1} parent=11 // pred_region
        _
      $region56: #{cell_forward.1} parent=11 // pred_fallthru
        _
      // Predicated region
      $region57: #{cell_forward.1} parent=11 // pred_check
        %p387 = pneg %p311
      $region58: #{cell_forward.1} parent=11 // pred_check_branch
        %389 = sbr.rel (%p387) target = $region60
      $region59: #{cell_forward.1} parent=11 // pred_region
        _
      $region60: #{cell_forward.1} parent=11 // pred_fallthru
        _
    $region12: #{cell_forward.1} parent=5 // pred_fallthru
      _
    %p390 = scmp.lt.s32.totalorder %s19, 2
    // Predicated region
    $region61: #{cell_forward.1} parent=5 // pred_check
      %p391 = pneg %p390
    $region62: #{cell_forward.1} parent=5 // pred_check_branch
      %393 = sbr.rel (%p391) target = $region64
    $region63: #{cell_forward.1} parent=5 // pred_region
      // Predicated region
      $region65: #{cell_forward.1} parent=63 // pred_check
        %p394 = pneg %p53
      $region66: #{cell_forward.1} parent=63 // pred_check_branch
        %396 = sbr.rel (%p394) target = $region68
      $region67: #{cell_forward.1} parent=63 // pred_region
        %s397 = smul.u32 2, %s27
        %p398 = scmp.lt.s32.totalorder %s26, 1
        %s399 = scalar_select %p398, %s26, 1
        %p400 = scmp.lt.s32.totalorder %s397, 1
        %s401 = scalar_select %p400, %s397, 1
        %s402 = smul.addr %s399, 2
        %s403 = sadd.s32 %s401, %s402
        %s404 = smul.addr %s403, 8
        %s405 = scalar_lea.vmem %s0, %s404
        %s406 = smul.u32 2, %s27
      $region68: #{cell_forward.1} parent=63 // pred_fallthru
        _
    $region64: #{cell_forward.1} parent=5 // pred_fallthru
      _
    %p407 = scmp.le.s32.totalorder 1, %s19
    %p408 = scmp.lt.s32.totalorder %s19, 3
    %p409 = pnand %p407, %p408
    %p410 = pneg %p409
    // Predicated region
    $region69: #{cell_forward.1} parent=5 // pred_check
      _
    $region70: #{cell_forward.1} parent=5 // pred_check_branch
      %412 = sbr.rel (%p409) target = $region72
    $region71: #{cell_forward.1} parent=5 // pred_region
      %s413 = ssub.s32 %s19, 1
      %s414 = smul.u32 2, %s29
      %p415 = scmp.lt.s32.totalorder %s28, 1
      %s416 = scalar_select %p415, %s28, 1
      %p417 = scmp.lt.s32.totalorder %s414, 1
      %s418 = scalar_select %p417, %s414, 1
      %s419 = smul.addr %s416, 2
      %s420 = sadd.s32 %s418, %s419
      %s421 = smul.addr %s420, 8
      %s422 = scalar_lea.vmem %s0, %s421
      %p423 = pneg %p59
      %p424 = pneg %p56
      %p425 = pneg %p80
      %p426 = pneg %p77
      %p427 = pneg %p101
      %p428 = pneg %p98
      %p429 = pneg %p122
      %p430 = pneg %p119
      %p431 = pneg %p143
      %p432 = pneg %p140
      %p433 = pneg %p164
      %p434 = pneg %p161
      %p435 = pneg %p185
      %p436 = pneg %p182
      %p437 = pneg %p206
      %p438 = pneg %p203
      %p439 = pneg %p227
      %p440 = pneg %p224
      %p441 = pneg %p248
      %p442 = pneg %p245
      %p443 = pneg %p269
      %p444 = pneg %p266
      %p445 = pneg %p290
      %p446 = pneg %p287
      %p447 = pneg %p311
      %p448 = pneg %p308
      %p449 = pneg %p339
      %p450 = pneg %p336
      %s451 = smul.u32 2, %s29
      %p452 = scmp.lt.s32.totalorder %s28, 1
      %s453 = scalar_select %p452, %s28, 1
      %p454 = scmp.lt.s32.totalorder %s451, 1
      %s455 = scalar_select %p454, %s451, 1
      %s456 = smul.addr %s453, 2
      %s457 = sadd.s32 %s455, %s456
      %s458 = smul.addr %s457, 8
      %s459 = scalar_lea.vmem %s13, %s458
      %s460 = smul.u32 2, %s29
      %p461 = scmp.lt.s32.totalorder %s28, 1
      %s462 = scalar_select %p461, %s28, 1
      %p463 = scmp.lt.s32.totalorder %s460, 1
      %s464 = scalar_select %p463, %s460, 1
      %s465 = smul.addr %s462, 2
      %s466 = sadd.s32 %s464, %s465
      %s467 = smul.addr %s466, 8
      %s468 = scalar_lea.vmem %s0, %s467
      %s469 = smul.u32 2, %s29
      %s470 = smul.u32 2, %s29
      %p471 = scmp.lt.s32.totalorder %s28, 1
      %s472 = scalar_select %p471, %s28, 1
      %p473 = scmp.lt.s32.totalorder %s470, 1
      %s474 = scalar_select %p473, %s470, 1
      %s475 = smul.addr %s472, 2
      %s476 = sadd.s32 %s474, %s475
      %s477 = smul.addr %s476, 8
      %s478 = scalar_lea.vmem %s13, %s477
      %s479 = smul.u32 2, %s29
      %v481 = vld [vmem:[%s468] sm:$0xff]
      %v482 = vld [vmem:[%s468 + $0x8] sm:$0xff]
      %v483 = vpack.c.bf16 %v481, %v481
      %v484 = vpack.c.bf16 %v482, %v482
      %v485 = vld [vmem:[%s1] sm:$0xf]
      %v486 = vld [vmem:[%s1 + $0x4] sm:$0xf]
      %v487 = vld [vmem:[%s2] sm:$0xff]
      %v488 = vld [vmem:[%s2 + $0x8] sm:$0xff]
      %v489 = vld [vmem:[%s3] sm:$0xf]
      %v490 = vld [vmem:[%s4] sm:$0xff]
      %492 = vset.pattern.permute.xlu0 0
      %493 = vperm.xlu0 %492, %v487
      %v494 = vpop.permute.xlu0 %493
      %497 = vset.pattern.permute.xlu0 0
      %498 = vperm.xlu0 %497, %v488
      %v499 = vpop.permute.xlu0 %498
      %v503 = vunpack.c.l.b16 %v485
      %v504 = vunpack.c.l.b16 %v486
      %v505 = vpack.c.b16 %v504, %v503
      %vm506 = vcmask 64512
      %v508 = vsel %vm506, %v505, 0
      %vm510 = vcmask 1043456
      %v512 = vsel %vm510, %v483, 0
      %v515 = vsel %vm510, %v484, 0
      %517 = vmatpush.bf16.msra.mxu0 0
      %518 = vmatpush.bf16.msra.mxu0 0
      %519 = vmatpush.bf16.msra.mxu0 0
      %520 = vmatpush.bf16.msra.mxu0 0
      %521 = vmatpush.bf16.msra.mxu0 0
      %522 = vmatpush.bf16.msra.mxu0 0
      %523 = vmatpush.bf16.msra.mxu0 0
      %524 = vmatpush.bf16.msra.mxu0 %v512
      %525 = vmatmul.bf16.gmra.mxu0 %v508
      %v526 = vpop.f32.mrf.mxu0
      %v527 = vadd.f32 %v494, %v526
      %v528 = vpop.f32.mrf.mxu0
      %v529 = vadd.f32 %v499, %v528
      %530 = vdwg.mxu0
      %531 = vmatpush.bf16.msra.mxu0 0
      %532 = vmatpush.bf16.msra.mxu0 0
      %533 = vmatpush.bf16.msra.mxu0 0
      %534 = vmatpush.bf16.msra.mxu0 0
      %535 = vmatpush.bf16.msra.mxu0 0
      %536 = vmatpush.bf16.msra.mxu0 0
      %537 = vmatpush.bf16.msra.mxu0 0
      %538 = vmatpush.bf16.msra.mxu0 %v515
      %539 = vmatmul.bf16.gmra.mxu0 %v508
      %v540 = vpop.f32.mrf.mxu0
      %v541 = vadd.f32 %v494, %v540
      %v542 = vpop.f32.mrf.mxu0
      %v543 = vadd.f32 %v499, %v542
      %544 = vdwg.mxu0
      %v545 = vmax.f32 %v527, 0.0
      %v546 = vmax.f32 %v541, 0.0
      %v547 = vmax.f32 %v529, 0.0
      %v548 = vmax.f32 %v543, 0.0
      %v549 = vpack.c.bf16 %v547, %v545
      %v550 = vpack.c.bf16 %v548, %v546
      %552 = vset.pattern.permute.xlu0 0
      %553 = vperm.xlu0 %552, %v490
      %v554 = vpop.permute.xlu0 %553
      %vm556 = vcmask 130048
      %v558 = vsel %vm556, %v489, 0
      %560 = vmatpush.bf16.msra.mxu0 0
      %561 = vmatpush.bf16.msra.mxu0 0
      %562 = vmatpush.bf16.msra.mxu0 0
      %563 = vmatpush.bf16.msra.mxu0 0
      %564 = vmatpush.bf16.msra.mxu0 0
      %565 = vmatpush.bf16.msra.mxu0 0
      %566 = vmatpush.bf16.msra.mxu0 0
      %567 = vmatpush.bf16.msra.mxu0 %v549
      %568 = vmatmul.bf16.gmra.mxu0 %v558
      %v569 = vpop.f32.mrf.mxu0
      %v570 = vadd.f32 %v554, %v569
      %v571 = vpop.f32.mrf.mxu0
      %572 = vdwg.mxu0
      %573 = vmatpush.bf16.msra.mxu0 0
      %574 = vmatpush.bf16.msra.mxu0 0
      %575 = vmatpush.bf16.msra.mxu0 0
      %576 = vmatpush.bf16.msra.mxu0 0
      %577 = vmatpush.bf16.msra.mxu0 0
      %578 = vmatpush.bf16.msra.mxu0 0
      %579 = vmatpush.bf16.msra.mxu0 0
      %580 = vmatpush.bf16.msra.mxu0 %v550
      %581 = vmatmul.bf16.gmra.mxu0 %v558
      %v582 = vpop.f32.mrf.mxu0
      %v583 = vadd.f32 %v554, %v582
      %v584 = vpop.f32.mrf.mxu0
      %585 = vdwg.mxu0
      %v586 = vld [vmem:[%s5] sm:$0xf]
      %v587 = vld [vmem:[%s6] sm:$0xff]
      %v589 = vsel %vm506, %v586, 0
      %591 = vmatpush.bf16.msra.mxu0 0
      %592 = vmatpush.bf16.msra.mxu0 0
      %593 = vmatpush.bf16.msra.mxu0 0
      %594 = vmatpush.bf16.msra.mxu0 0
      %595 = vmatpush.bf16.msra.mxu0 0
      %596 = vmatpush.bf16.msra.mxu0 0
      %597 = vmatpush.bf16.msra.mxu0 0
      %598 = vmatpush.bf16.msra.mxu0 %v512
      %599 = vmatmul.bf16.gmra.mxu0 %v589
      %v600 = vpop.f32.mrf.mxu0
      %v601 = vadd.f32 0.0, %v600
      %v602 = vpop.f32.mrf.mxu0
      %603 = vdwg.mxu0
      %604 = vmatpush.bf16.msra.mxu0 0
      %605 = vmatpush.bf16.msra.mxu0 0
      %606 = vmatpush.bf16.msra.mxu0 0
      %607 = vmatpush.bf16.msra.mxu0 0
      %608 = vmatpush.bf16.msra.mxu0 0
      %609 = vmatpush.bf16.msra.mxu0 0
      %610 = vmatpush.bf16.msra.mxu0 0
      %611 = vmatpush.bf16.msra.mxu0 %v515
      %612 = vmatmul.bf16.gmra.mxu0 %v589
      %v613 = vpop.f32.mrf.mxu0
      %v614 = vadd.f32 0.0, %v613
      %v615 = vpop.f32.mrf.mxu0
      %616 = vdwg.mxu0
      %v617 = vadd.f32 %v570, %v601
      %v618 = vadd.f32 %v583, %v614
      %620 = vset.pattern.permute.xlu0 0
      %621 = vperm.xlu0 %620, %v587
      %v622 = vpop.permute.xlu0 %621
      %v624 = vadd.f32 %v617, %v622
      %v625 = vadd.f32 %v618, %v622
      %v626 = vpack.c.bf16 %v624, %v624
      %v627 = vpack.c.bf16 %v625, %v625
      %v628 = vld [vmem:[%s7] sm:$0xf]
      %v629 = vld [vmem:[%s7 + $0x4] sm:$0xf]
      %v630 = vld [vmem:[%s8] sm:$0xff]
      %v631 = vld [vmem:[%s8 + $0x8] sm:$0xff]
      %v632 = vld [vmem:[%s9] sm:$0xf]
      %v633 = vld [vmem:[%s10] sm:$0xff]
      %635 = vset.pattern.permute.xlu0 0
      %636 = vperm.xlu0 %635, %v630
      %v637 = vpop.permute.xlu0 %636
      %640 = vset.pattern.permute.xlu0 0
      %641 = vperm.xlu0 %640, %v631
      %v642 = vpop.permute.xlu0 %641
      %v646 = vunpack.c.l.b16 %v628
      %v647 = vunpack.c.l.b16 %v629
      %v648 = vpack.c.b16 %v647, %v646
      %v650 = vsel %vm506, %v648, 0
      %v653 = vsel %vm510, %v626, 0
      %v656 = vsel %vm510, %v627, 0
      %658 = vmatpush.bf16.msra.mxu0 0
      %659 = vmatpush.bf16.msra.mxu0 0
      %660 = vmatpush.bf16.msra.mxu0 0
      %661 = vmatpush.bf16.msra.mxu0 0
      %662 = vmatpush.bf16.msra.mxu0 0
      %663 = vmatpush.bf16.msra.mxu0 0
      %664 = vmatpush.bf16.msra.mxu0 0
      %665 = vmatpush.bf16.msra.mxu0 %v653
      %666 = vmatmul.bf16.gmra.mxu0 %v650
      %v667 = vpop.f32.mrf.mxu0
      %v668 = vadd.f32 %v637, %v667
      %v669 = vpop.f32.mrf.mxu0
      %v670 = vadd.f32 %v642, %v669
      %671 = vdwg.mxu0
      %672 = vmatpush.bf16.msra.mxu0 0
      %673 = vmatpush.bf16.msra.mxu0 0
      %674 = vmatpush.bf16.msra.mxu0 0
      %675 = vmatpush.bf16.msra.mxu0 0
      %676 = vmatpush.bf16.msra.mxu0 0
      %677 = vmatpush.bf16.msra.mxu0 0
      %678 = vmatpush.bf16.msra.mxu0 0
      %679 = vmatpush.bf16.msra.mxu0 %v656
      %680 = vmatmul.bf16.gmra.mxu0 %v650
      %v681 = vpop.f32.mrf.mxu0
      %v682 = vadd.f32 %v637, %v681
      %v683 = vpop.f32.mrf.mxu0
      %v684 = vadd.f32 %v642, %v683
      %685 = vdwg.mxu0
      %v686 = vmax.f32 %v668, 0.0
      %v687 = vmax.f32 %v682, 0.0
      %v688 = vmax.f32 %v670, 0.0
      %v689 = vmax.f32 %v684, 0.0
      %v690 = vpack.c.bf16 %v688, %v686
      %v691 = vpack.c.bf16 %v689, %v687
      %693 = vset.pattern.permute.xlu0 0
      %694 = vperm.xlu0 %693, %v633
      %v695 = vpop.permute.xlu0 %694
      %v698 = vsel %vm556, %v632, 0
      %700 = vmatpush.bf16.msra.mxu0 0
      %701 = vmatpush.bf16.msra.mxu0 0
      %702 = vmatpush.bf16.msra.mxu0 0
      %703 = vmatpush.bf16.msra.mxu0 0
      %704 = vmatpush.bf16.msra.mxu0 0
      %705 = vmatpush.bf16.msra.mxu0 0
      %706 = vmatpush.bf16.msra.mxu0 0
      %707 = vmatpush.bf16.msra.mxu0 %v690
      %708 = vmatmul.bf16.gmra.mxu0 %v698
      %v709 = vpop.f32.mrf.mxu0
      %v710 = vadd.f32 %v695, %v709
      %v711 = vpop.f32.mrf.mxu0
      %712 = vdwg.mxu0
      %713 = vmatpush.bf16.msra.mxu0 0
      %714 = vmatpush.bf16.msra.mxu0 0
      %715 = vmatpush.bf16.msra.mxu0 0
      %716 = vmatpush.bf16.msra.mxu0 0
      %717 = vmatpush.bf16.msra.mxu0 0
      %718 = vmatpush.bf16.msra.mxu0 0
      %719 = vmatpush.bf16.msra.mxu0 0
      %720 = vmatpush.bf16.msra.mxu0 %v691
      %721 = vmatmul.bf16.gmra.mxu0 %v698
      %v722 = vpop.f32.mrf.mxu0
      %v723 = vadd.f32 %v695, %v722
      %v724 = vpop.f32.mrf.mxu0
      %725 = vdwg.mxu0
      %v726 = vld [vmem:[%s11] sm:$0xf]
      %v727 = vld [vmem:[%s12] sm:$0xff]
      %v729 = vsel %vm506, %v726, 0
      %731 = vmatpush.bf16.msra.mxu0 0
      %732 = vmatpush.bf16.msra.mxu0 0
      %733 = vmatpush.bf16.msra.mxu0 0
      %734 = vmatpush.bf16.msra.mxu0 0
      %735 = vmatpush.bf16.msra.mxu0 0
      %736 = vmatpush.bf16.msra.mxu0 0
      %737 = vmatpush.bf16.msra.mxu0 0
      %738 = vmatpush.bf16.msra.mxu0 %v653
      %739 = vmatmul.bf16.gmra.mxu0 %v729
      %v740 = vpop.f32.mrf.mxu0
      %v741 = vadd.f32 0.0, %v740
      %v742 = vpop.f32.mrf.mxu0
      %743 = vdwg.mxu0
      %744 = vmatpush.bf16.msra.mxu0 0
      %745 = vmatpush.bf16.msra.mxu0 0
      %746 = vmatpush.bf16.msra.mxu0 0
      %747 = vmatpush.bf16.msra.mxu0 0
      %748 = vmatpush.bf16.msra.mxu0 0
      %749 = vmatpush.bf16.msra.mxu0 0
      %750 = vmatpush.bf16.msra.mxu0 0
      %751 = vmatpush.bf16.msra.mxu0 %v656
      %752 = vmatmul.bf16.gmra.mxu0 %v729
      %v753 = vpop.f32.mrf.mxu0
      %v754 = vadd.f32 0.0, %v753
      %v755 = vpop.f32.mrf.mxu0
      %756 = vdwg.mxu0
      %v757 = vadd.f32 %v710, %v741
      %v758 = vadd.f32 %v723, %v754
      %760 = vset.pattern.permute.xlu0 0
      %761 = vperm.xlu0 %760, %v727
      %v762 = vpop.permute.xlu0 %761
      %v764 = vadd.f32 %v757, %v762
      %v765 = vadd.f32 %v758, %v762
      %766 = vst [vmem:[%s478] sm:$0xff] %v764
      %767 = vst [vmem:[%s478 + $0x8] sm:$0xff] %v765
      %s768 = smul.u32 2, %s29
      %p769 = scmp.lt.s32.totalorder %s28, 1
      %s770 = scalar_select %p769, %s28, 1
      %p771 = scmp.lt.s32.totalorder %s768, 1
      %s772 = scalar_select %p771, %s768, 1
      %s773 = smul.addr %s770, 2
      %s774 = sadd.s32 %s772, %s773
      %s775 = smul.addr %s774, 8
      %s776 = scalar_lea.vmem %s13, %s775
      // Predicated region
      $region73: #{cell_forward.1} parent=71 // pred_check
        %p777 = pneg %p336
      $region74: #{cell_forward.1} parent=71 // pred_check_branch
        %779 = sbr.rel (%p777) target = $region76
      $region75: #{cell_forward.1} parent=71 // pred_region
        %s780 = smul.u32 2, %s29
      $region76: #{cell_forward.1} parent=71 // pred_fallthru
        _
    $region72: #{cell_forward.1} parent=5 // pred_fallthru
      _
    %p781 = scmp.le.s32.totalorder 2, %s19
    // Predicated region
    $region77: #{cell_forward.1} parent=5 // pred_check
      %p782 = pneg %p781
    $region78: #{cell_forward.1} parent=5 // pred_check_branch
      %784 = sbr.rel (%p782) target = $region80
    $region79: #{cell_forward.1} parent=5 // pred_region
      %s785 = ssub.s32 %s19, 2
      // Predicated region
      $region81: #{cell_forward.1} parent=79 // pred_check
        %p786 = pneg %p342
      $region82: #{cell_forward.1} parent=79 // pred_check_branch
        %788 = sbr.rel (%p786) target = $region84
      $region83: #{cell_forward.1} parent=79 // pred_region
        %s789 = smul.u32 2, %s31
        %p790 = scmp.lt.s32.totalorder %s30, 1
        %s791 = scalar_select %p790, %s30, 1
        %p792 = scmp.lt.s32.totalorder %s789, 1
        %s793 = scalar_select %p792, %s789, 1
        %s794 = smul.addr %s791, 2
        %s795 = sadd.s32 %s793, %s794
        %s796 = smul.addr %s795, 8
        %s797 = scalar_lea.vmem %s13, %s796
      $region84: #{cell_forward.1} parent=79 // pred_fallthru
        _
    $region80: #{cell_forward.1} parent=5 // pred_fallthru
      _
  $region6: #{cell_forward.1} parent=0 // loop_footer
    %s23 = sadd.s32 1, %s19
  $region7: #{cell_forward.1} parent=0 // loop_footer_branch
    %18 = sbr.rel target = $region3
  $region8: #{cell_forward.1} parent=0 // loop_exit
    _

</llo_original>
